<compile_context>
chip_gen: v7x
topology: tpu7x:2x2x1
jax: 0.10.0
libtpu: 0.0.40
codegen_flags: <defaults>
</compile_context>

<pallas_src>
import functools

import jax
import jax.numpy as jnp
from jax.experimental import pallas as pl
from jax.experimental.pallas import tpu as pltpu


def _res2net_kernel(x_ref, w_ref, p_ref, pos_ref, out_ref, *,
                    scale, kernel_size, dilation, chunk, seg_len, pad):
    T = seg_len
    L = x_ref.shape[1]          # Bb * T lanes in this tile
    f32 = jnp.float32

    # Lane position within each length-T batch segment (precomputed int32).
    pos = jnp.broadcast_to(pos_ref[...], (chunk, L))   # hoisted once

    def roll_plus(v, delta):
        """y[:, p] = v[:, (p + delta) mod L], static int delta (XLU rotate)."""
        d = delta % L
        if d == 0:
            return v
        return pltpu.roll(v, shift=L - d, axis=1)

    def shifted_tap(v, off):
        """S[:, b*T + t] = v[:, b*T + reflect(t + off)]  ('same' reflect pad)."""
        if off == 0:
            return v
        s = roll_plus(v, off)
        if off > 0:
            # last `off` columns of every segment wrapped into the next one
            for j in range(off):
                tgt = T - off + j           # wrong column (within segment)
                src = T - 2 - j             # reflected source column
                fix = roll_plus(v, src - tgt)
                s = jnp.where(pos == tgt, fix, s)
        else:
            a = -off
            for j in range(a):
                tgt = j
                src = a - j
                fix = roll_plus(v, src - tgt)
                s = jnp.where(pos == tgt, fix, s)
        return s

    # chunk 0: identity passthrough
    out_ref[0:chunk, :] = x_ref[0:chunk, :].astype(out_ref.dtype)

    y_prev = None
    for i in range(scale - 1):
        lo = (i + 1) * chunk
        x_i = x_ref[lo:lo + chunk, :].astype(f32)            # (chunk, L)
        inp = x_i if i == 0 else x_i + y_prev

        # im2col: stack the K dilated taps along the contraction axis.
        taps = [shifted_tap(inp, k * dilation - pad) for k in range(kernel_size)]
        x_col = jnp.concatenate(taps, axis=0)                # (K*chunk, L)

        # single MXU matmul for all K taps, f32 accumulation
        acc = jnp.dot(w_ref[i], x_col.astype(w_ref.dtype),
                      preferred_element_type=f32)            # (chunk, L)

        # bias -> ReLU -> folded BatchNorm affine (f32 VPU epilogue)
        acc = acc + p_ref[i, 0]
        h = jnp.maximum(acc, 0.0)
        y_i = h * p_ref[i, 1] + p_ref[i, 2]

        out_ref[lo:lo + chunk, :] = y_i.astype(out_ref.dtype)
        y_prev = y_i


def _pick_block_batch(B, T, C, itemsize=4, vmem_budget=20 << 20):
    """Batch block so the (C, Bb*T) x/out tiles obey the 128-lane rule + VMEM."""
    valid = [bb for bb in range(1, B + 1)
             if B % bb == 0 and (bb == B or (bb * T) % 128 == 0)]
    fitting = [bb for bb in valid if 4 * C * bb * T * itemsize <= vmem_budget]
    cands = fitting if fitting else valid
    for bb in cands:                          # smallest block giving >=512 lanes
        if bb * T >= 512:
            return bb
    return cands[-1]


def res2net_block_pallas(x, conv_w, conv_b, gamma, beta, rmean, rvar, *,
                         scale, kernel_size, dilation, eps=1e-5,
                         operand_dtype=jnp.float32, block_batch=None):
    """x: (B, C, T).  conv_w: (scale-1, chunk, chunk, K).  Others: (scale-1, chunk)."""
    B, C, T = x.shape
    assert C % scale == 0
    assert kernel_size % 2 == 1
    chunk = C // scale
    pad = dilation * (kernel_size - 1) // 2
    assert pad <= T - 1, "reflect padding requires pad <= T-1"

    Bb = _pick_block_batch(B, T, C) if block_batch is None else block_batch
    assert B % Bb == 0
    L = Bb * T

    # (B, C, T) -> (C, B*T): channels on sublanes, batch*time on lanes.
    x_t = jnp.transpose(x, (1, 0, 2)).reshape(C, B * T).astype(operand_dtype)

    # Conv weights -> (scale-1, chunk_out, K*chunk_in), matching X_col's
    # tap-major / channel-minor row order.
    w_flat = (jnp.transpose(conv_w, (0, 1, 3, 2))
              .reshape(scale - 1, chunk, kernel_size * chunk)
              .astype(operand_dtype))

    # Fold BatchNorm running stats into per-channel affine; pack bias/scale/
    # shift into a single small tensor (fewer tiny DMAs).
    inv_std = 1.0 / jnp.sqrt(rvar + eps)
    bn_scale = gamma * inv_std
    bn_shift = beta - rmean * bn_scale
    params = jnp.stack([conv_b, bn_scale, bn_shift], axis=1)       # (scale-1, 3, chunk)
    params = params.reshape(scale - 1, 3, chunk, 1).astype(jnp.float32)

    # Lane position within each length-T batch segment.
    pos = jnp.tile(jnp.arange(T, dtype=jnp.int32), B).reshape(1, B * T)

    kernel = functools.partial(_res2net_kernel, scale=scale,
                               kernel_size=kernel_size, dilation=dilation,
                               chunk=chunk, seg_len=T, pad=pad)

    out_t = pl.pallas_call(
        kernel,
        out_shape=jax.ShapeDtypeStruct((C, B * T), jnp.float32),
        grid=(B // Bb,),
        in_specs=[
            pl.BlockSpec((C, L), lambda g: (0, g)),                          # x
            pl.BlockSpec((scale - 1, chunk, kernel_size * chunk),
                         lambda g: (0, 0, 0)),                               # W_flat
            pl.BlockSpec((scale - 1, 3, chunk, 1), lambda g: (0, 0, 0, 0)),  # bias/BN
            pl.BlockSpec((1, L), lambda g: (0, g)),                          # seg pos
        ],
        out_specs=pl.BlockSpec((C, L), lambda g: (0, g)),
        compiler_params=pltpu.CompilerParams(
            dimension_semantics=("parallel",),
            vmem_limit_bytes=32 * 1024 * 1024),
    )(x_t, w_flat, params, pos)

    return out_t.reshape(C, B, T).transpose(1, 0, 2)


def res2net_block_ref(x, conv_w, conv_b, gamma, beta, rmean, rvar,
                      *, scale, kernel_size, dilation, eps=1e-5):
    """Pure-JAX reference mirroring the PyTorch forward (eval mode)."""
    B, C, T = x.shape
    chunk = C // scale
    pad = dilation * (kernel_size - 1) // 2
    ys = [x[:, :chunk]]
    y_prev = None
    for i in range(scale - 1):
        x_i = x[:, (i + 1) * chunk:(i + 2) * chunk]
        inp = x_i if i == 0 else x_i + y_prev
        xp = jnp.pad(inp, ((0, 0), (0, 0), (pad, pad)), mode="reflect")
        out = jnp.zeros((B, chunk, T), jnp.float32) + conv_b[i][None, :, None]
        for k in range(kernel_size):
            out = out + jnp.einsum("oc,bct->bot", conv_w[i, :, :, k],
                                   xp[:, :, k * dilation:k * dilation + T],
                                   precision=jax.lax.Precision.HIGHEST)
        h = jnp.maximum(out, 0.0)
        y_i = ((h - rmean[i][None, :, None])
               / jnp.sqrt(rvar[i][None, :, None] + eps)
               * gamma[i][None, :, None] + beta[i][None, :, None])
        ys.append(y_i)
        y_prev = y_i
    return jnp.concatenate(ys, axis=1)


if __name__ == "__main__":
    # Small shapes consistent with the module: (batch, channels, time)
    B, C, T = 2, 32, 64
    scale, kernel_size, dilation = 4, 3, 2
    chunk = C // scale

    key = jax.random.PRNGKey(0)
    kx, kw, kb, kg, kbe, km, kv = jax.random.split(key, 7)

    x = jax.random.normal(kx, (B, C, T), jnp.float32)
    conv_w = 0.1 * jax.random.normal(kw, (scale - 1, chunk, chunk, kernel_size),
                                     jnp.float32)            # (blk, C_out, C_in, K)
    conv_b = 0.1 * jax.random.normal(kb, (scale - 1, chunk), jnp.float32)
    gamma = 1.0 + 0.1 * jax.random.normal(kg, (scale - 1, chunk), jnp.float32)
    beta = 0.1 * jax.random.normal(kbe, (scale - 1, chunk), jnp.float32)
    rmean = 0.1 * jax.random.normal(km, (scale - 1, chunk), jnp.float32)
    rvar = jax.random.uniform(kv, (scale - 1, chunk), jnp.float32, 0.5, 1.5)

    ref = res2net_block_ref(x, conv_w, conv_b, gamma, beta, rmean, rvar,
                            scale=scale, kernel_size=kernel_size,
                            dilation=dilation)

    # f32 operands (tight check)
    out = res2net_block_pallas(x, conv_w, conv_b, gamma, beta, rmean, rvar,
                               scale=scale, kernel_size=kernel_size,
                               dilation=dilation)
    out = jax.block_until_ready(out)
    assert out.shape == (B, C, T)
    err = float(jnp.max(jnp.abs(out - ref)))
    assert jnp.allclose(out, ref, atol=5e-3, rtol=5e-3), \
        f"f32 max abs err = {err}"

    # bf16 MXU operands (v5e/v6e HBM-traffic halving); f32 epilogue, loose check.
    out_bf16 = res2net_block_pallas(x, conv_w, conv_b, gamma, beta, rmean, rvar,
                                    scale=scale, kernel_size=kernel_size,
                                    dilation=dilation,
                                    operand_dtype=jnp.bfloat16)
    out_bf16 = jax.block_until_ready(out_bf16)
    err_bf16 = float(jnp.max(jnp.abs(out_bf16 - ref)))
    assert jnp.allclose(out_bf16, ref, atol=1e-1, rtol=1e-1), \
        f"bf16 max abs err = {err_bf16}"

    print("KERNEL_OK")
</pallas_src>

<mosaic_0001>
module attributes {stable_mosaic.version = 11 : i64} {
  func.func @_res2net_kernel(%arg0: i32, %arg1: memref<32x128xf32, #tpu.memory_space<vmem>>, %arg2: memref<3x8x24xf32, #tpu.memory_space<vmem>>, %arg3: memref<3x3x8x1xf32, #tpu.memory_space<vmem>>, %arg4: memref<1x128xi32, #tpu.memory_space<vmem>>, %arg5: memref<32x128xf32, #tpu.memory_space<vmem>>) attributes {dimension_semantics = [#tpu.dimension_semantics<parallel>], iteration_bounds = array<i64: 1>, scalar_prefetch = 0 : i64, scratch_operands = 0 : i64, tpu.core_type = #tpu.core_type<tc>, window_params = [{transform_indices = @transform_0, window_bounds = array<i64: 32, 128>}, {pipeline_mode = #tpu.pipeline_mode<synchronous>, transform_indices = @transform_1, window_bounds = array<i64: 3, 8, 24>}, {pipeline_mode = #tpu.pipeline_mode<synchronous>, transform_indices = @transform_2, window_bounds = array<i64: 3, 3, 8, 1>}, {transform_indices = @transform_3, window_bounds = array<i64: 1, 128>}, {transform_indices = @transform_4, window_bounds = array<i64: 32, 128>}]} {
    %c0 = arith.constant 0 : index
    %c0_0 = arith.constant 0 : index
    %0 = vector.load %arg4[%c0, %c0_0] : memref<1x128xi32, #tpu.memory_space<vmem>>, vector<1x128xi32>
    %1 = vector.shape_cast %0 : vector<1x128xi32> to vector<1x128xi32>
    %2 = vector.broadcast %1 : vector<1x128xi32> to vector<8x128xi32>
    %c0_1 = arith.constant 0 : index
    %c0_2 = arith.constant 0 : index
    %3 = vector.load %arg1[%c0_1, %c0_2] : memref<32x128xf32, #tpu.memory_space<vmem>>, vector<8x128xf32>
    %c0_3 = arith.constant 0 : index
    %c0_4 = arith.constant 0 : index
    %4 = vector.load %arg5[%c0_3, %c0_4] : memref<32x128xf32, #tpu.memory_space<vmem>>, vector<8x128xf32>
    tpu.vector_store %arg5[%c0_3, %c0_4], %3 {strides = array<i32>} : memref<32x128xf32, #tpu.memory_space<vmem>>, vector<8x128xf32>,
    %c8 = arith.constant 8 : index
    %c0_5 = arith.constant 0 : index
    %5 = vector.load %arg1[%c8, %c0_5] : memref<32x128xf32, #tpu.memory_space<vmem>>, vector<8x128xf32>
    %c2_i32 = arith.constant 2 : i32
    %6 = tpu.dynamic_rotate %5 by %c2_i32 dim 1 : vector<8x128xf32>, i32 -> vector<8x128xf32>
    %c126_i32 = arith.constant 126 : i32
    %7 = tpu.dynamic_rotate %5 by %c126_i32 dim 1 : vector<8x128xf32>, i32 -> vector<8x128xf32>
    %c0_i32 = arith.constant 0 : i32
    %8 = vector.broadcast %c0_i32 : i32 to vector<8x128xi32>
    %9 = arith.cmpi eq, %2, %8 : vector<8x128xi32>
    %10 = arith.select %9, %7, %6 : vector<8x128xi1>, vector<8x128xf32>
    %c1_i32 = arith.constant 1 : i32
    %11 = vector.broadcast %c1_i32 : i32 to vector<8x128xi32>
    %12 = arith.cmpi eq, %2, %11 : vector<8x128xi32>
    %13 = arith.select %12, %5, %10 : vector<8x128xi1>, vector<8x128xf32>
    %c126_i32_6 = arith.constant 126 : i32
    %14 = tpu.dynamic_rotate %5 by %c126_i32_6 dim 1 : vector<8x128xf32>, i32 -> vector<8x128xf32>
    %c62_i32 = arith.constant 62 : i32
    %15 = vector.broadcast %c62_i32 : i32 to vector<8x128xi32>
    %16 = arith.cmpi eq, %2, %15 : vector<8x128xi32>
    %17 = arith.select %16, %5, %14 : vector<8x128xi1>, vector<8x128xf32>
    %c2_i32_7 = arith.constant 2 : i32
    %18 = tpu.dynamic_rotate %5 by %c2_i32_7 dim 1 : vector<8x128xf32>, i32 -> vector<8x128xf32>
    %c63_i32 = arith.constant 63 : i32
    %19 = vector.broadcast %c63_i32 : i32 to vector<8x128xi32>
    %20 = arith.cmpi eq, %2, %19 : vector<8x128xi32>
    %21 = arith.select %20, %18, %17 : vector<8x128xi1>, vector<8x128xf32>
    %22 = tpu.concatenate %13, %5, %21 in 0 : vector<8x128xf32>, vector<8x128xf32>, vector<8x128xf32> -> vector<24x128xf32>
    %c0_8 = arith.constant 0 : index
    %c0_9 = arith.constant 0 : index
    %c0_10 = arith.constant 0 : index
    %23 = vector.load %arg2[%c0_8, %c0_9, %c0_10] : memref<3x8x24xf32, #tpu.memory_space<vmem>>, vector<1x8x24xf32>
    %24 = vector.shape_cast %23 : vector<1x8x24xf32> to vector<8x24xf32>
    %cst = arith.constant dense<0.000000e+00> : vector<8x128xf32>
    %25 = tpu.matmul %24, %22, %cst {dimension_numbers = #tpu.dot_dimension_numbers<[1], [0], [0], [1], [0, 0, 1, 1], [], []>} : vector<8x24xf32>, vector<24x128xf32>, vector<8x128xf32> -> vector<8x128xf32>
    %c0_11 = arith.constant 0 : index
    %c0_12 = arith.constant 0 : index
    %c0_13 = arith.constant 0 : index
    %c0_14 = arith.constant 0 : index
    %26 = vector.load %arg3[%c0_11, %c0_12, %c0_13, %c0_14] : memref<3x3x8x1xf32, #tpu.memory_space<vmem>>, vector<1x1x8x1xf32>
    %27 = vector.shape_cast %26 : vector<1x1x8x1xf32> to vector<8x1xf32>
    %28 = vector.broadcast %27 : vector<8x1xf32> to vector<8x128xf32>
    %29 = arith.addf %25, %28 : vector<8x128xf32>
    %cst_15 = arith.constant 0.000000e+00 : f32
    %30 = vector.broadcast %cst_15 : f32 to vector<8x128xf32>
    %31 = arith.maximumf %29, %30 : vector<8x128xf32>
    %c0_16 = arith.constant 0 : index
    %c1 = arith.constant 1 : index
    %c0_17 = arith.constant 0 : index
    %c0_18 = arith.constant 0 : index
    %32 = vector.load %arg3[%c0_16, %c1, %c0_17, %c0_18] : memref<3x3x8x1xf32, #tpu.memory_space<vmem>>, vector<1x1x8x1xf32>
    %33 = vector.shape_cast %32 : vector<1x1x8x1xf32> to vector<8x1xf32>
    %34 = vector.broadcast %33 : vector<8x1xf32> to vector<8x128xf32>
    %35 = arith.mulf %31, %34 : vector<8x128xf32>
    %c0_19 = arith.constant 0 : index
    %c2 = arith.constant 2 : index
    %c0_20 = arith.constant 0 : index
    %c0_21 = arith.constant 0 : index
    %36 = vector.load %arg3[%c0_19, %c2, %c0_20, %c0_21] : memref<3x3x8x1xf32, #tpu.memory_space<vmem>>, vector<1x1x8x1xf32>
    %37 = vector.shape_cast %36 : vector<1x1x8x1xf32> to vector<8x1xf32>
    %38 = vector.broadcast %37 : vector<8x1xf32> to vector<8x128xf32>
    %39 = arith.addf %35, %38 : vector<8x128xf32>
    %c8_22 = arith.constant 8 : index
    %c0_23 = arith.constant 0 : index
    %40 = vector.load %arg5[%c8_22, %c0_23] : memref<32x128xf32, #tpu.memory_space<vmem>>, vector<8x128xf32>
    tpu.vector_store %arg5[%c8_22, %c0_23], %39 {strides = array<i32>} : memref<32x128xf32, #tpu.memory_space<vmem>>, vector<8x128xf32>,
    %c16 = arith.constant 16 : index
    %c0_24 = arith.constant 0 : index
    %41 = vector.load %arg1[%c16, %c0_24] : memref<32x128xf32, #tpu.memory_space<vmem>>, vector<8x128xf32>
    %42 = arith.addf %41, %39 : vector<8x128xf32>
    %c2_i32_25 = arith.constant 2 : i32
    %43 = tpu.dynamic_rotate %42 by %c2_i32_25 dim 1 : vector<8x128xf32>, i32 -> vector<8x128xf32>
    %c126_i32_26 = arith.constant 126 : i32
    %44 = tpu.dynamic_rotate %42 by %c126_i32_26 dim 1 : vector<8x128xf32>, i32 -> vector<8x128xf32>
    %c0_i32_27 = arith.constant 0 : i32
    %45 = vector.broadcast %c0_i32_27 : i32 to vector<8x128xi32>
    %46 = arith.cmpi eq, %2, %45 : vector<8x128xi32>
    %47 = arith.select %46, %44, %43 : vector<8x128xi1>, vector<8x128xf32>
    %c1_i32_28 = arith.constant 1 : i32
    %48 = vector.broadcast %c1_i32_28 : i32 to vector<8x128xi32>
    %49 = arith.cmpi eq, %2, %48 : vector<8x128xi32>
    %50 = arith.select %49, %42, %47 : vector<8x128xi1>, vector<8x128xf32>
    %c126_i32_29 = arith.constant 126 : i32
    %51 = tpu.dynamic_rotate %42 by %c126_i32_29 dim 1 : vector<8x128xf32>, i32 -> vector<8x128xf32>
    %c62_i32_30 = arith.constant 62 : i32
    %52 = vector.broadcast %c62_i32_30 : i32 to vector<8x128xi32>
    %53 = arith.cmpi eq, %2, %52 : vector<8x128xi32>
    %54 = arith.select %53, %42, %51 : vector<8x128xi1>, vector<8x128xf32>
    %c2_i32_31 = arith.constant 2 : i32
    %55 = tpu.dynamic_rotate %42 by %c2_i32_31 dim 1 : vector<8x128xf32>, i32 -> vector<8x128xf32>
    %c63_i32_32 = arith.constant 63 : i32
    %56 = vector.broadcast %c63_i32_32 : i32 to vector<8x128xi32>
    %57 = arith.cmpi eq, %2, %56 : vector<8x128xi32>
    %58 = arith.select %57, %55, %54 : vector<8x128xi1>, vector<8x128xf32>
    %59 = tpu.concatenate %50, %42, %58 in 0 : vector<8x128xf32>, vector<8x128xf32>, vector<8x128xf32> -> vector<24x128xf32>
    %c1_33 = arith.constant 1 : index
    %c0_34 = arith.constant 0 : index
    %c0_35 = arith.constant 0 : index
    %60 = vector.load %arg2[%c1_33, %c0_34, %c0_35] : memref<3x8x24xf32, #tpu.memory_space<vmem>>, vector<1x8x24xf32>
    %61 = vector.shape_cast %60 : vector<1x8x24xf32> to vector<8x24xf32>
    %cst_36 = arith.constant dense<0.000000e+00> : vector<8x128xf32>
    %62 = tpu.matmul %61, %59, %cst_36 {dimension_numbers = #tpu.dot_dimension_numbers<[1], [0], [0], [1], [0, 0, 1, 1], [], []>} : vector<8x24xf32>, vector<24x128xf32>, vector<8x128xf32> -> vector<8x128xf32>
    %c1_37 = arith.constant 1 : index
    %c0_38 = arith.constant 0 : index
    %c0_39 = arith.constant 0 : index
    %c0_40 = arith.constant 0 : index
    %63 = vector.load %arg3[%c1_37, %c0_38, %c0_39, %c0_40] : memref<3x3x8x1xf32, #tpu.memory_space<vmem>>, vector<1x1x8x1xf32>
    %64 = vector.shape_cast %63 : vector<1x1x8x1xf32> to vector<8x1xf32>
    %65 = vector.broadcast %64 : vector<8x1xf32> to vector<8x128xf32>
    %66 = arith.addf %62, %65 : vector<8x128xf32>
    %cst_41 = arith.constant 0.000000e+00 : f32
    %67 = vector.broadcast %cst_41 : f32 to vector<8x128xf32>
    %68 = arith.maximumf %66, %67 : vector<8x128xf32>
    %c1_42 = arith.constant 1 : index
    %c1_43 = arith.constant 1 : index
    %c0_44 = arith.constant 0 : index
    %c0_45 = arith.constant 0 : index
    %69 = vector.load %arg3[%c1_42, %c1_43, %c0_44, %c0_45] : memref<3x3x8x1xf32, #tpu.memory_space<vmem>>, vector<1x1x8x1xf32>
    %70 = vector.shape_cast %69 : vector<1x1x8x1xf32> to vector<8x1xf32>
    %71 = vector.broadcast %70 : vector<8x1xf32> to vector<8x128xf32>
    %72 = arith.mulf %68, %71 : vector<8x128xf32>
    %c1_46 = arith.constant 1 : index
    %c2_47 = arith.constant 2 : index
    %c0_48 = arith.constant 0 : index
    %c0_49 = arith.constant 0 : index
    %73 = vector.load %arg3[%c1_46, %c2_47, %c0_48, %c0_49] : memref<3x3x8x1xf32, #tpu.memory_space<vmem>>, vector<1x1x8x1xf32>
    %74 = vector.shape_cast %73 : vector<1x1x8x1xf32> to vector<8x1xf32>
    %75 = vector.broadcast %74 : vector<8x1xf32> to vector<8x128xf32>
    %76 = arith.addf %72, %75 : vector<8x128xf32>
    %c16_50 = arith.constant 16 : index
    %c0_51 = arith.constant 0 : index
    %77 = vector.load %arg5[%c16_50, %c0_51] : memref<32x128xf32, #tpu.memory_space<vmem>>, vector<8x128xf32>
    tpu.vector_store %arg5[%c16_50, %c0_51], %76 {strides = array<i32>} : memref<32x128xf32, #tpu.memory_space<vmem>>, vector<8x128xf32>,
    %c24 = arith.constant 24 : index
    %c0_52 = arith.constant 0 : index
    %78 = vector.load %arg1[%c24, %c0_52] : memref<32x128xf32, #tpu.memory_space<vmem>>, vector<8x128xf32>
    %79 = arith.addf %78, %76 : vector<8x128xf32>
    %c2_i32_53 = arith.constant 2 : i32
    %80 = tpu.dynamic_rotate %79 by %c2_i32_53 dim 1 : vector<8x128xf32>, i32 -> vector<8x128xf32>
    %c126_i32_54 = arith.constant 126 : i32
    %81 = tpu.dynamic_rotate %79 by %c126_i32_54 dim 1 : vector<8x128xf32>, i32 -> vector<8x128xf32>
    %c0_i32_55 = arith.constant 0 : i32
    %82 = vector.broadcast %c0_i32_55 : i32 to vector<8x128xi32>
    %83 = arith.cmpi eq, %2, %82 : vector<8x128xi32>
    %84 = arith.select %83, %81, %80 : vector<8x128xi1>, vector<8x128xf32>
    %c1_i32_56 = arith.constant 1 : i32
    %85 = vector.broadcast %c1_i32_56 : i32 to vector<8x128xi32>
    %86 = arith.cmpi eq, %2, %85 : vector<8x128xi32>
    %87 = arith.select %86, %79, %84 : vector<8x128xi1>, vector<8x128xf32>
    %c126_i32_57 = arith.constant 126 : i32
    %88 = tpu.dynamic_rotate %79 by %c126_i32_57 dim 1 : vector<8x128xf32>, i32 -> vector<8x128xf32>
    %c62_i32_58 = arith.constant 62 : i32
    %89 = vector.broadcast %c62_i32_58 : i32 to vector<8x128xi32>
    %90 = arith.cmpi eq, %2, %89 : vector<8x128xi32>
    %91 = arith.select %90, %79, %88 : vector<8x128xi1>, vector<8x128xf32>
    %c2_i32_59 = arith.constant 2 : i32
    %92 = tpu.dynamic_rotate %79 by %c2_i32_59 dim 1 : vector<8x128xf32>, i32 -> vector<8x128xf32>
    %c63_i32_60 = arith.constant 63 : i32
    %93 = vector.broadcast %c63_i32_60 : i32 to vector<8x128xi32>
    %94 = arith.cmpi eq, %2, %93 : vector<8x128xi32>
    %95 = arith.select %94, %92, %91 : vector<8x128xi1>, vector<8x128xf32>
    %96 = tpu.concatenate %87, %79, %95 in 0 : vector<8x128xf32>, vector<8x128xf32>, vector<8x128xf32> -> vector<24x128xf32>
    %c2_61 = arith.constant 2 : index
    %c0_62 = arith.constant 0 : index
    %c0_63 = arith.constant 0 : index
    %97 = vector.load %arg2[%c2_61, %c0_62, %c0_63] : memref<3x8x24xf32, #tpu.memory_space<vmem>>, vector<1x8x24xf32>
    %98 = vector.shape_cast %97 : vector<1x8x24xf32> to vector<8x24xf32>
    %cst_64 = arith.constant dense<0.000000e+00> : vector<8x128xf32>
    %99 = tpu.matmul %98, %96, %cst_64 {dimension_numbers = #tpu.dot_dimension_numbers<[1], [0], [0], [1], [0, 0, 1, 1], [], []>} : vector<8x24xf32>, vector<24x128xf32>, vector<8x128xf32> -> vector<8x128xf32>
    %c2_65 = arith.constant 2 : index
    %c0_66 = arith.constant 0 : index
    %c0_67 = arith.constant 0 : index
    %c0_68 = arith.constant 0 : index
    %100 = vector.load %arg3[%c2_65, %c0_66, %c0_67, %c0_68] : memref<3x3x8x1xf32, #tpu.memory_space<vmem>>, vector<1x1x8x1xf32>
    %101 = vector.shape_cast %100 : vector<1x1x8x1xf32> to vector<8x1xf32>
    %102 = vector.broadcast %101 : vector<8x1xf32> to vector<8x128xf32>
    %103 = arith.addf %99, %102 : vector<8x128xf32>
    %cst_69 = arith.constant 0.000000e+00 : f32
    %104 = vector.broadcast %cst_69 : f32 to vector<8x128xf32>
    %105 = arith.maximumf %103, %104 : vector<8x128xf32>
    %c2_70 = arith.constant 2 : index
    %c1_71 = arith.constant 1 : index
    %c0_72 = arith.constant 0 : index
    %c0_73 = arith.constant 0 : index
    %106 = vector.load %arg3[%c2_70, %c1_71, %c0_72, %c0_73] : memref<3x3x8x1xf32, #tpu.memory_space<vmem>>, vector<1x1x8x1xf32>
    %107 = vector.shape_cast %106 : vector<1x1x8x1xf32> to vector<8x1xf32>
    %108 = vector.broadcast %107 : vector<8x1xf32> to vector<8x128xf32>
    %109 = arith.mulf %105, %108 : vector<8x128xf32>
    %c2_74 = arith.constant 2 : index
    %c2_75 = arith.constant 2 : index
    %c0_76 = arith.constant 0 : index
    %c0_77 = arith.constant 0 : index
    %110 = vector.load %arg3[%c2_74, %c2_75, %c0_76, %c0_77] : memref<3x3x8x1xf32, #tpu.memory_space<vmem>>, vector<1x1x8x1xf32>
    %111 = vector.shape_cast %110 : vector<1x1x8x1xf32> to vector<8x1xf32>
    %112 = vector.broadcast %111 : vector<8x1xf32> to vector<8x128xf32>
    %113 = arith.addf %109, %112 : vector<8x128xf32>
    %c24_78 = arith.constant 24 : index
    %c0_79 = arith.constant 0 : index
    %114 = vector.load %arg5[%c24_78, %c0_79] : memref<32x128xf32, #tpu.memory_space<vmem>>, vector<8x128xf32>
    tpu.vector_store %arg5[%c24_78, %c0_79], %113 {strides = array<i32>} : memref<32x128xf32, #tpu.memory_space<vmem>>, vector<8x128xf32>,
    return
  }
  func.func @transform_0(%arg0: i32) -> (i32, i32) {
    %c0_i32 = arith.constant 0 : i32
    %c0_i32_0 = arith.constant 0 : i32
    return %c0_i32, %arg0 : i32, i32
  }
  func.func @transform_1(%arg0: i32) -> (i32, i32, i32) {
    %c0_i32 = arith.constant 0 : i32
    %c0_i32_0 = arith.constant 0 : i32
    %c0_i32_1 = arith.constant 0 : i32
    %c0_i32_2 = arith.constant 0 : i32
    return %c0_i32, %c0_i32_0, %c0_i32_1 : i32, i32, i32
  }
  func.func @transform_2(%arg0: i32) -> (i32, i32, i32, i32) {
    %c0_i32 = arith.constant 0 : i32
    %c0_i32_0 = arith.constant 0 : i32
    %c0_i32_1 = arith.constant 0 : i32
    %c0_i32_2 = arith.constant 0 : i32
    %c0_i32_3 = arith.constant 0 : i32
    return %c0_i32, %c0_i32_0, %c0_i32_1, %c0_i32_2 : i32, i32, i32, i32
  }
  func.func @transform_3(%arg0: i32) -> (i32, i32) {
    %c0_i32 = arith.constant 0 : i32
    %c0_i32_0 = arith.constant 0 : i32
    return %c0_i32, %arg0 : i32, i32
  }
  func.func @transform_4(%arg0: i32) -> (i32, i32) {
    %c0_i32 = arith.constant 0 : i32
    %c0_i32_0 = arith.constant 0 : i32
    return %c0_i32, %arg0 : i32, i32
  }
}

</mosaic_0001>

<llo_original>
// kernel: tpu_custom_call.1
$region0: #{tpu_custom_call.1}
  #allocation0 [shape = 'u32[]', space=smem, size = 0x4, offset = 0x4, fixed_abs, tag = 'smem constant byte address 0x4 - core index']
  #allocation1 [shape = 'u32[144,128]{1,0:T(1,128)}', space=vmem, size = 0x12000, scoped, tag = 'internal scratch']
  %s0 = inlined_call_operand.vmem [shape: f32[32,128], index: 0, kind: input, shape index: {}]
  %s1 = inlined_call_operand.vmem [shape: f32[3,8,24], index: 1, kind: input, shape index: {}]
  %s2 = inlined_call_operand.vmem [shape: f32[3,3,8,1], index: 2, kind: input, shape index: {}]
  %s3 = inlined_call_operand.vmem [shape: s32[1,128], index: 3, kind: input, shape index: {}]
  %s4 = inlined_call_operand.hbm [shape: f32[32,128], index: 4, kind: output, shape index: {}]
  %s5 = sld [smem:[#allocation0]]
  $region26: #{tpu_custom_call.1} parent=0
    _
  %s7 = ssub.s32 1, %s5
  %s8 = scalar_select 0, %s7, %s5
  $region1: #{tpu_custom_call.1} parent=0
    #allocation2 [shape = 'u8[16384]{0}', space=vmem, size = 0x4000, scoped, tag = 'output window, operand 0, single buffered']
    #allocation3 [shape = 's32[1]{0}', space=sflag, size = 0x4, scoped, tag = 'scoped memory for tpu_custom_call.1']
    %9 = vsyncpa [#allocation3], 0
    // Predicated region
    $region2: #{tpu_custom_call.1} parent=1 // pred_check
      _
    $region3: #{tpu_custom_call.1} parent=1 // pred_check_branch
      %11 = sbr.rel (0) target = $region5
    $region4: #{tpu_custom_call.1} parent=1 // pred_region
      _
    $region5: #{tpu_custom_call.1} parent=1 // pred_fallthru
      _
    // Predicated region
    $region6: #{tpu_custom_call.1} parent=1 // pred_check
      _
    $region7: #{tpu_custom_call.1} parent=1 // pred_check_branch
      %13 = sbr.rel (0) target = $region9
    $region8: #{tpu_custom_call.1} parent=1 // pred_region
      _
    $region9: #{tpu_custom_call.1} parent=1 // pred_fallthru
      _
    // Predicated region
    $region10: #{tpu_custom_call.1} parent=1 // pred_check
      _
    $region11: #{tpu_custom_call.1} parent=1 // pred_check_branch
      %15 = sbr.rel (0) target = $region13
    $region12: #{tpu_custom_call.1} parent=1 // pred_region
      _
    $region13: #{tpu_custom_call.1} parent=1 // pred_fallthru
      _
    // Predicated region
    $region14: #{tpu_custom_call.1} parent=1 // pred_check
      _
    $region15: #{tpu_custom_call.1} parent=1 // pred_check_branch
      %17 = sbr.rel (0) target = $region17
    $region16: #{tpu_custom_call.1} parent=1 // pred_region
      _
    $region17: #{tpu_custom_call.1} parent=1 // pred_fallthru
      _
    %v18 = vld [vmem:[%s3] sm:$0x1]
    %v19 = vlaneseq
    %v20 = vshrl.u32 %v19, 7
    %v21 = vsub.s32 0, %v20
    %v22 = vrot.slane %v18, %v21
    %v23 = vld [vmem:[%s0] sm:$0xff]
    %24 = vst [vmem:[#allocation2] sm:$0xff] %v23
    %v25 = vld [vmem:[%s0 + $0x8] sm:$0xff]
    %26 = vrot.lane.b32.xlu0 %v25, 2
    %v27 = vpop.permute.xlu0 %26
    %28 = vrot.lane.b32.xlu0 %v25, 126
    %v29 = vpop.permute.xlu0 %28
    %vm30 = vcmp.eq.s32.totalorder %v22, 0
    %v31 = vsel %vm30, %v29, %v27
    %vm32 = vcmp.eq.s32.totalorder %v22, 1
    %v33 = vsel %vm32, %v25, %v31
    %vm34 = vcmp.eq.s32.totalorder %v22, 62
    %v35 = vsel %vm34, %v25, %v29
    %vm36 = vcmp.eq.s32.totalorder %v22, 63
    %v37 = vsel %vm36, %v27, %v35
    %v38 = vld [vmem:[%s1] sm:$0xff]
    %v39 = vld [vmem:[%s2] sm:$0xff]
    %41 = vset.pattern.permute.xlu0 0
    %42 = vperm.xlu0 %41, %v39
    %v43 = vpop.permute.xlu0 %42
    %vm45 = vcmask 195584
    %v47 = vsel %vm45, %v38, 0
    %49 = vmatprep.subr.mxu0 0.0
    %50 = vmatpush1.msra.mxu0 %v33
    %51 = vmatprep.subr.mxu0 0.0
    %52 = vmatpush1.msra.mxu0 %v25
    %53 = vmatprep.subr.mxu0 0.0
    %54 = vmatpush1.msra.mxu0 %v37
    %55 = vmatprep.subr.mxu0 0.0
    %56 = vmatpush1.msra.mxu0 0.0
    %57 = vmatprep.subr.mxu0 0.0
    %58 = vmatpush1.msra.mxu0 0.0
    %59 = vmatprep.subr.mxu0 0.0
    %60 = vmatpush1.msra.mxu0 0.0
    %61 = vmatprep.subr.mxu0 0.0
    %62 = vmatpush1.msra.mxu0 0.0
    %63 = vmatprep.subr.mxu0 0.0
    %64 = vmatpush1.msra.mxu0 0.0
    %65 = vmatprep.subr.mxu0 0.0
    %66 = vmatpush1.msra.mxu0 0.0
    %67 = vmatprep.subr.mxu0 0.0
    %68 = vmatpush1.msra.mxu0 0.0
    %69 = vmatprep.subr.mxu0 0.0
    %70 = vmatpush1.msra.mxu0 0.0
    %71 = vmatprep.subr.mxu0 0.0
    %72 = vmatpush1.msra.mxu0 0.0
    %73 = vmatprep.subr.mxu0 0.0
    %74 = vmatpush1.msra.mxu0 0.0
    %75 = vmatprep.subr.mxu0 0.0
    %76 = vmatpush1.msra.mxu0 0.0
    %77 = vmatprep.subr.mxu0 0.0
    %78 = vmatpush1.msra.mxu0 0.0
    %79 = vmatprep.subr.mxu0 0.0
    %80 = vmatpush1.msra.mxu0 0.0
    %81 = vmatprep.subr.mxu0 0.0
    %82 = vmatpush1.msra.mxu0 0.0
    %83 = vmatprep.subr.mxu0 0.0
    %84 = vmatpush1.msra.mxu0 0.0
    %85 = vmatprep.subr.mxu0 0.0
    %86 = vmatpush1.msra.mxu0 0.0
    %87 = vmatprep.subr.mxu0 0.0
    %88 = vmatpush1.msra.mxu0 0.0
    %89 = vmatprep.subr.mxu0 0.0
    %90 = vmatpush1.msra.mxu0 0.0
    %91 = vmatprep.subr.mxu0 0.0
    %92 = vmatpush1.msra.mxu0 0.0
    %93 = vmatprep.subr.mxu0 0.0
    %94 = vmatpush1.msra.mxu0 0.0
    %95 = vmatprep.subr.mxu0 0.0
    %96 = vmatpush1.msra.mxu0 0.0
    %97 = vmatprep.subr.mxu0 0.0
    %98 = vmatpush1.msra.mxu0 0.0
    %99 = vmatprep.subr.mxu0 0.0
    %100 = vmatpush1.msra.mxu0 0.0
    %101 = vmatprep.subr.mxu0 0.0
    %102 = vmatpush1.msra.mxu0 0.0
    %103 = vmatprep.subr.mxu0 0.0
    %104 = vmatpush1.msra.mxu0 0.0
    %105 = vmatprep.subr.mxu0 0.0
    %106 = vmatpush1.msra.mxu0 0.0
    %107 = vmatprep.subr.mxu0 0.0
    %108 = vmatpush1.msra.mxu0 0.0
    %109 = vmatprep.subr.mxu0 0.0
    %110 = vmatpush1.msra.mxu0 0.0
    %111 = vmatprep.subr.mxu0 0.0
    %112 = vmatpush1.msra.mxu0 0.0
    %113 = vmatprep.mubr.f32.mxu0 0.0
    %114 = vmatmul.mubr.f32.gmra.mrb[0].mxu0 %v47
    %v115 = vpop.f32.mrb[0].mxu0
    %v116 = vadd.f32 %v43, %v115
    %v117 = vpop.f32.mrb[0].mxu0
    %118 = vdwg.mxu0
    %v119 = vmax.f32 %v116, 0.0
    %s120 = scalar_lea.vmem %s2, 8
    %v121 = vld [vmem:[%s120] sm:$0xff]
    %123 = vset.pattern.permute.xlu0 0
    %124 = vperm.xlu0 %123, %v121
    %v125 = vpop.permute.xlu0 %124
    %v127 = vmul.f32 %v119, %v125
    %s128 = scalar_lea.vmem %s2, 16
    %v129 = vld [vmem:[%s128] sm:$0xff]
    %131 = vset.pattern.permute.xlu0 0
    %132 = vperm.xlu0 %131, %v129
    %v133 = vpop.permute.xlu0 %132
    %v135 = vadd.f32 %v127, %v133
    %136 = vst [vmem:[#allocation2 + $0x8] sm:$0xff] %v135
    %v137 = vld [vmem:[%s0 + $0x10] sm:$0xff]
    %v138 = vadd.f32 %v137, %v135
    %139 = vrot.lane.b32.xlu0 %v138, 2
    %v140 = vpop.permute.xlu0 %139
    %141 = vrot.lane.b32.xlu0 %v138, 126
    %v142 = vpop.permute.xlu0 %141
    %v143 = vsel %vm30, %v142, %v140
    %v144 = vsel %vm32, %v138, %v143
    %v145 = vsel %vm34, %v138, %v142
    %v146 = vsel %vm36, %v140, %v145
    %s147 = scalar_lea.vmem %s1, 8
    %v148 = vld [vmem:[%s147] sm:$0xff]
    %s149 = scalar_lea.vmem %s2, 24
    %v150 = vld [vmem:[%s149] sm:$0xff]
    %152 = vset.pattern.permute.xlu0 0
    %153 = vperm.xlu0 %152, %v150
    %v154 = vpop.permute.xlu0 %153
    %v157 = vsel %vm45, %v148, 0
    %159 = vmatprep.subr.mxu0 0.0
    %160 = vmatpush1.msra.mxu0 %v144
    %161 = vmatprep.subr.mxu0 0.0
    %162 = vmatpush1.msra.mxu0 %v138
    %163 = vmatprep.subr.mxu0 0.0
    %164 = vmatpush1.msra.mxu0 %v146
    %165 = vmatprep.subr.mxu0 0.0
    %166 = vmatpush1.msra.mxu0 0.0
    %167 = vmatprep.subr.mxu0 0.0
    %168 = vmatpush1.msra.mxu0 0.0
    %169 = vmatprep.subr.mxu0 0.0
    %170 = vmatpush1.msra.mxu0 0.0
    %171 = vmatprep.subr.mxu0 0.0
    %172 = vmatpush1.msra.mxu0 0.0
    %173 = vmatprep.subr.mxu0 0.0
    %174 = vmatpush1.msra.mxu0 0.0
    %175 = vmatprep.subr.mxu0 0.0
    %176 = vmatpush1.msra.mxu0 0.0
    %177 = vmatprep.subr.mxu0 0.0
    %178 = vmatpush1.msra.mxu0 0.0
    %179 = vmatprep.subr.mxu0 0.0
    %180 = vmatpush1.msra.mxu0 0.0
    %181 = vmatprep.subr.mxu0 0.0
    %182 = vmatpush1.msra.mxu0 0.0
    %183 = vmatprep.subr.mxu0 0.0
    %184 = vmatpush1.msra.mxu0 0.0
    %185 = vmatprep.subr.mxu0 0.0
    %186 = vmatpush1.msra.mxu0 0.0
    %187 = vmatprep.subr.mxu0 0.0
    %188 = vmatpush1.msra.mxu0 0.0
    %189 = vmatprep.subr.mxu0 0.0
    %190 = vmatpush1.msra.mxu0 0.0
    %191 = vmatprep.subr.mxu0 0.0
    %192 = vmatpush1.msra.mxu0 0.0
    %193 = vmatprep.subr.mxu0 0.0
    %194 = vmatpush1.msra.mxu0 0.0
    %195 = vmatprep.subr.mxu0 0.0
    %196 = vmatpush1.msra.mxu0 0.0
    %197 = vmatprep.subr.mxu0 0.0
    %198 = vmatpush1.msra.mxu0 0.0
    %199 = vmatprep.subr.mxu0 0.0
    %200 = vmatpush1.msra.mxu0 0.0
    %201 = vmatprep.subr.mxu0 0.0
    %202 = vmatpush1.msra.mxu0 0.0
    %203 = vmatprep.subr.mxu0 0.0
    %204 = vmatpush1.msra.mxu0 0.0
    %205 = vmatprep.subr.mxu0 0.0
    %206 = vmatpush1.msra.mxu0 0.0
    %207 = vmatprep.subr.mxu0 0.0
    %208 = vmatpush1.msra.mxu0 0.0
    %209 = vmatprep.subr.mxu0 0.0
    %210 = vmatpush1.msra.mxu0 0.0
    %211 = vmatprep.subr.mxu0 0.0
    %212 = vmatpush1.msra.mxu0 0.0
    %213 = vmatprep.subr.mxu0 0.0
    %214 = vmatpush1.msra.mxu0 0.0
    %215 = vmatprep.subr.mxu0 0.0
    %216 = vmatpush1.msra.mxu0 0.0
    %217 = vmatprep.subr.mxu0 0.0
    %218 = vmatpush1.msra.mxu0 0.0
    %219 = vmatprep.subr.mxu0 0.0
    %220 = vmatpush1.msra.mxu0 0.0
    %221 = vmatprep.subr.mxu0 0.0
    %222 = vmatpush1.msra.mxu0 0.0
    %223 = vmatprep.mubr.f32.mxu0 0.0
    %224 = vmatmul.mubr.f32.gmra.mrb[0].mxu0 %v157
    %v225 = vpop.f32.mrb[0].mxu0
    %v226 = vadd.f32 %v154, %v225
    %v227 = vpop.f32.mrb[0].mxu0
    %228 = vdwg.mxu0
    %v229 = vmax.f32 %v226, 0.0
    %s230 = scalar_lea.vmem %s2, 32
    %v231 = vld [vmem:[%s230] sm:$0xff]
    %233 = vset.pattern.permute.xlu0 0
    %234 = vperm.xlu0 %233, %v231
    %v235 = vpop.permute.xlu0 %234
    %v237 = vmul.f32 %v229, %v235
    %s238 = scalar_lea.vmem %s2, 40
    %v239 = vld [vmem:[%s238] sm:$0xff]
    %241 = vset.pattern.permute.xlu0 0
    %242 = vperm.xlu0 %241, %v239
    %v243 = vpop.permute.xlu0 %242
    %v245 = vadd.f32 %v237, %v243
    %246 = vst [vmem:[#allocation2 + $0x10] sm:$0xff] %v245
    %v247 = vld [vmem:[%s0 + $0x18] sm:$0xff]
    %v248 = vadd.f32 %v247, %v245
    %249 = vrot.lane.b32.xlu0 %v248, 2
    %v250 = vpop.permute.xlu0 %249
    %251 = vrot.lane.b32.xlu0 %v248, 126
    %v252 = vpop.permute.xlu0 %251
    %v253 = vsel %vm30, %v252, %v250
    %v254 = vsel %vm32, %v248, %v253
    %v255 = vsel %vm34, %v248, %v252
    %v256 = vsel %vm36, %v250, %v255
    %s257 = scalar_lea.vmem %s1, 16
    %v258 = vld [vmem:[%s257] sm:$0xff]
    %s259 = scalar_lea.vmem %s2, 48
    %v260 = vld [vmem:[%s259] sm:$0xff]
    %262 = vset.pattern.permute.xlu0 0
    %263 = vperm.xlu0 %262, %v260
    %v264 = vpop.permute.xlu0 %263
    %v267 = vsel %vm45, %v258, 0
    %269 = vmatprep.subr.mxu0 0.0
    %270 = vmatpush1.msra.mxu0 %v254
    %271 = vmatprep.subr.mxu0 0.0
    %272 = vmatpush1.msra.mxu0 %v248
    %273 = vmatprep.subr.mxu0 0.0
    %274 = vmatpush1.msra.mxu0 %v256
    %275 = vmatprep.subr.mxu0 0.0
    %276 = vmatpush1.msra.mxu0 0.0
    %277 = vmatprep.subr.mxu0 0.0
    %278 = vmatpush1.msra.mxu0 0.0
    %279 = vmatprep.subr.mxu0 0.0
    %280 = vmatpush1.msra.mxu0 0.0
    %281 = vmatprep.subr.mxu0 0.0
    %282 = vmatpush1.msra.mxu0 0.0
    %283 = vmatprep.subr.mxu0 0.0
    %284 = vmatpush1.msra.mxu0 0.0
    %285 = vmatprep.subr.mxu0 0.0
    %286 = vmatpush1.msra.mxu0 0.0
    %287 = vmatprep.subr.mxu0 0.0
    %288 = vmatpush1.msra.mxu0 0.0
    %289 = vmatprep.subr.mxu0 0.0
    %290 = vmatpush1.msra.mxu0 0.0
    %291 = vmatprep.subr.mxu0 0.0
    %292 = vmatpush1.msra.mxu0 0.0
    %293 = vmatprep.subr.mxu0 0.0
    %294 = vmatpush1.msra.mxu0 0.0
    %295 = vmatprep.subr.mxu0 0.0
    %296 = vmatpush1.msra.mxu0 0.0
    %297 = vmatprep.subr.mxu0 0.0
    %298 = vmatpush1.msra.mxu0 0.0
    %299 = vmatprep.subr.mxu0 0.0
    %300 = vmatpush1.msra.mxu0 0.0
    %301 = vmatprep.subr.mxu0 0.0
    %302 = vmatpush1.msra.mxu0 0.0
    %303 = vmatprep.subr.mxu0 0.0
    %304 = vmatpush1.msra.mxu0 0.0
    %305 = vmatprep.subr.mxu0 0.0
    %306 = vmatpush1.msra.mxu0 0.0
    %307 = vmatprep.subr.mxu0 0.0
    %308 = vmatpush1.msra.mxu0 0.0
    %309 = vmatprep.subr.mxu0 0.0
    %310 = vmatpush1.msra.mxu0 0.0
    %311 = vmatprep.subr.mxu0 0.0
    %312 = vmatpush1.msra.mxu0 0.0
    %313 = vmatprep.subr.mxu0 0.0
    %314 = vmatpush1.msra.mxu0 0.0
    %315 = vmatprep.subr.mxu0 0.0
    %316 = vmatpush1.msra.mxu0 0.0
    %317 = vmatprep.subr.mxu0 0.0
    %318 = vmatpush1.msra.mxu0 0.0
    %319 = vmatprep.subr.mxu0 0.0
    %320 = vmatpush1.msra.mxu0 0.0
    %321 = vmatprep.subr.mxu0 0.0
    %322 = vmatpush1.msra.mxu0 0.0
    %323 = vmatprep.subr.mxu0 0.0
    %324 = vmatpush1.msra.mxu0 0.0
    %325 = vmatprep.subr.mxu0 0.0
    %326 = vmatpush1.msra.mxu0 0.0
    %327 = vmatprep.subr.mxu0 0.0
    %328 = vmatpush1.msra.mxu0 0.0
    %329 = vmatprep.subr.mxu0 0.0
    %330 = vmatpush1.msra.mxu0 0.0
    %331 = vmatprep.subr.mxu0 0.0
    %332 = vmatpush1.msra.mxu0 0.0
    %333 = vmatprep.mubr.f32.mxu0 0.0
    %334 = vmatmul.mubr.f32.gmra.mrb[0].mxu0 %v267
    %v335 = vpop.f32.mrb[0].mxu0
    %v336 = vadd.f32 %v264, %v335
    %v337 = vpop.f32.mrb[0].mxu0
    %338 = vdwg.mxu0
    %v339 = vmax.f32 %v336, 0.0
    %s340 = scalar_lea.vmem %s2, 56
    %v341 = vld [vmem:[%s340] sm:$0xff]
    %343 = vset.pattern.permute.xlu0 0
    %344 = vperm.xlu0 %343, %v341
    %v345 = vpop.permute.xlu0 %344
    %v347 = vmul.f32 %v339, %v345
    %s348 = scalar_lea.vmem %s2, 64
    %v349 = vld [vmem:[%s348] sm:$0xff]
    %351 = vset.pattern.permute.xlu0 0
    %352 = vperm.xlu0 %351, %v349
    %v353 = vpop.permute.xlu0 %352
    %v355 = vadd.f32 %v347, %v353
    %356 = vst [vmem:[#allocation2 + $0x18] sm:$0xff] %v355
    // Predicated region
    $region18: #{tpu_custom_call.1} parent=1 // pred_check
      _
    $region19: #{tpu_custom_call.1} parent=1 // pred_check_branch
      %358 = sbr.rel (0) target = $region21
    $region20: #{tpu_custom_call.1} parent=1 // pred_region
      %s360 = ssub.s32 512, 512
      %361 = vsyncadd [#allocation3], %s360
      %s362 = sshll.u32 [#allocation2], 4
      %s363 = int_to_ptr.vmem [resolvable:$true] %s362
      %368 = dma.vmem_to_hbm [thread:$0]  %s363, 512, %s4, [#allocation3], 128, 128, 8
    $region21: #{tpu_custom_call.1} parent=1 // pred_fallthru
      _
    // Predicated region
    $region22: #{tpu_custom_call.1} parent=1 // pred_check
      _
    $region23: #{tpu_custom_call.1} parent=1 // pred_check_branch
      %370 = sbr.rel (0) target = $region25
    $region24: #{tpu_custom_call.1} parent=1 // pred_region
      %371 = dma.done [#allocation3], 512
    $region25: #{tpu_custom_call.1} parent=1 // pred_fallthru
      _
    %372 = vsyncpa [#allocation3], 1

</llo_original>
